<compile_context>
chip_gen: v7x
topology: tpu7x:2x2x1
jax: 0.10.0
libtpu: 0.0.40
codegen_flags: <defaults>
</compile_context>

<pallas_src>
import functools

import jax
import jax.numpy as jnp
from jax.experimental import pallas as pl
from jax.experimental.pallas import tpu as pltpu

_LANE = 128
_ROW_ALIGN = 32              # multiple of every dtype's sublane packing (f32:8, bf16:16, int8:32)
_ACC_ROWS = 32               # 4 independent (8,128) accumulator vregs per quantity
_MAX_BLOCK_ROWS = 8192       # caps in-kernel f32 intermediates at 4 MiB each
_TARGET_STEP_BYTES = 4 * 1024 * 1024   # combined HBM bytes (both inputs) per grid step
_VMEM_LIMIT_BYTES = 40 * 1024 * 1024   # > v5e's 16 MiB scoped default, < v7x's 64 MiB physical

_PASSTHROUGH_DTYPES = (jnp.float32, jnp.bfloat16, jnp.int8, jnp.uint8, jnp.int32, jnp.uint32)


def _ceil_div(a, b):
    return -(-a // b)


def _round_up(a, b):
    return _ceil_div(a, b) * b


def _dice_partial_kernel(yt_ref, yp_ref, out_ref, *, block_rows, tail_rows, needs_mask):
    """grid = (num_splits, blocks_per_split); axis 0 'parallel', axis 1 'arbitrary'.

    out_ref: (1, 3, 32, 128) f32 block, revisited across axis 1 (accumulator):
        [0] intersection partials, [1] sum(y_true) partials, [2] sum(y_pred) partials.
    """
    s = pl.program_id(0)
    j = pl.program_id(1)

    @pl.when(j == 0)
    def _():
        out_ref[...] = jnp.zeros_like(out_ref)

    # Inputs arrive in their native (narrow) dtype; cast per-tile on the VPU.
    yt = yt_ref[...].astype(jnp.float32)
    yp = yp_ref[...].astype(jnp.float32)

    folds = block_rows // _ACC_ROWS

    def accumulate(yt_v, yp_v):
        prod = yt_v * yp_v
        # Sublane-fold to (32, 128): pure vreg-wise VPU adds over 4 independent
        # accumulator vregs per quantity (no XLU reductions, no SMEM round trips).
        out_ref[0, 0] += prod.reshape(folds, _ACC_ROWS, _LANE).sum(axis=0)
        out_ref[0, 1] += yt_v.reshape(folds, _ACC_ROWS, _LANE).sum(axis=0)
        out_ref[0, 2] += yp_v.reshape(folds, _ACC_ROWS, _LANE).sum(axis=0)

    if needs_mask:
        # Only the very last block of the whole stream is partial; the steady
        # state path stays completely mask-free.
        is_tail = jnp.logical_and(s == pl.num_programs(0) - 1,
                                  j == pl.num_programs(1) - 1)

        @pl.when(jnp.logical_not(is_tail))
        def _():
            accumulate(yt, yp)

        @pl.when(is_tail)
        def _():
            # Rows >= tail_rows are out-of-bounds (unspecified VMEM data) -> zero
            # them BEFORE the multiply.  tail_rows is a compile-time constant.
            row_ids = jax.lax.broadcasted_iota(jnp.int32, (block_rows, _LANE), 0)
            valid = row_ids < tail_rows
            accumulate(jnp.where(valid, yt, 0.0), jnp.where(valid, yp, 0.0))
    else:
        accumulate(yt, yp)


def _prep_flat(x):
    x = jnp.reshape(x, (-1,))                       # metadata-only
    if x.dtype == jnp.bool_:
        # Keep the HBM stream at 1 byte/elem; the f32 cast happens on the VPU.
        x = x.astype(jnp.int8)
    elif not any(x.dtype == d for d in _PASSTHROUGH_DTYPES):
        x = x.astype(jnp.float32)                   # rare dtypes (f64/i64/...) only
    return x


def _partial_sums(yt2, yp2, rows):
    """Run the streaming kernel over a (rows, 128) pair; return the 3 scalars."""
    bytes_per_row = _LANE * (yt2.dtype.itemsize + yp2.dtype.itemsize)
    block_rows = max(
        _ROW_ALIGN,
        min(_MAX_BLOCK_ROWS,
            (_TARGET_STEP_BYTES // bytes_per_row) // _ROW_ALIGN * _ROW_ALIGN))
    block_rows = min(block_rows, _round_up(rows, _ROW_ALIGN))

    blocks_total = _ceil_div(rows, block_rows)
    # Use both v7x TensorCores only when that introduces no phantom (re-read) blocks.
    num_splits = 2 if (blocks_total >= 2 and blocks_total % 2 == 0) else 1
    blocks_per_split = blocks_total // num_splits
    tail_rows = rows - (blocks_total - 1) * block_rows
    needs_mask = tail_rows != block_rows

    def in_map(s, j):
        return (s * blocks_per_split + j, 0)

    kernel = functools.partial(
        _dice_partial_kernel,
        block_rows=block_rows,
        tail_rows=tail_rows,
        needs_mask=needs_mask,
    )

    out_bytes = num_splits * 3 * _ACC_ROWS * _LANE * 4
    cost = pl.CostEstimate(
        flops=5 * rows * _LANE,
        transcendentals=0,
        bytes_accessed=(yt2.size * yt2.dtype.itemsize
                        + yp2.size * yp2.dtype.itemsize
                        + out_bytes),
    )

    partials = pl.pallas_call(
        kernel,
        out_shape=jax.ShapeDtypeStruct((num_splits, 3, _ACC_ROWS, _LANE), jnp.float32),
        grid_spec=pltpu.PrefetchScalarGridSpec(
            num_scalar_prefetch=0,
            grid=(num_splits, blocks_per_split),
            in_specs=[
                pl.BlockSpec((block_rows, _LANE), in_map),
                pl.BlockSpec((block_rows, _LANE), in_map),
            ],
            out_specs=pl.BlockSpec((1, 3, _ACC_ROWS, _LANE), lambda s, j: (s, 0, 0, 0)),
        ),
        compiler_params=pltpu.CompilerParams(
            dimension_semantics=("parallel", "arbitrary"),
            vmem_limit_bytes=_VMEM_LIMIT_BYTES,
        ),
        cost_estimate=cost,
    )(yt2, yp2)

    # Tiny final reduction in the wrapper (<= 96 KiB).
    inter = jnp.sum(partials[:, 0])
    sum_t = jnp.sum(partials[:, 1])
    sum_p = jnp.sum(partials[:, 2])
    return inter, sum_t, sum_p


def dice_score(y_true, y_pred, smooth: float = 0.0):
    """Pallas equivalent of DiceScore.forward(y_true, y_pred)."""
    yt = _prep_flat(y_true)
    yp = _prep_flat(y_pred)
    n = yt.shape[0]
    n_main = (n // _LANE) * _LANE

    inter = jnp.float32(0.0)
    sum_t = jnp.float32(0.0)
    sum_p = jnp.float32(0.0)

    if n_main > 0:
        if n_main == n:
            yt2 = yt.reshape(-1, _LANE)             # metadata-only reshape
            yp2 = yp.reshape(-1, _LANE)
        else:
            # Aligned prefix only; the prefix slice is the only copy made
            # (no jnp.pad of the full arrays).
            yt2 = yt[:n_main].reshape(-1, _LANE)
            yp2 = yp[:n_main].reshape(-1, _LANE)
        inter, sum_t, sum_p = _partial_sums(yt2, yp2, n_main // _LANE)

    if n_main != n:
        # <128-element lane tail: tiny, handled directly in the wrapper.
        tt = yt[n_main:].astype(jnp.float32)
        tp = yp[n_main:].astype(jnp.float32)
        inter = inter + jnp.sum(tt * tp)
        sum_t = sum_t + jnp.sum(tt)
        sum_p = sum_p + jnp.sum(tp)

    sum_ = sum_t + sum_p
    # The extra 1e-6 matches the PyTorch reference exactly.
    return (2.0 * inter + smooth) / (sum_ + smooth + 1e-6)


if __name__ == "__main__":
    key = jax.random.PRNGKey(0)
    k1, k2 = jax.random.split(key)

    # Segmentation-like shapes: (batch=2, channels=4, H=16, W=16), f32/f32.
    y_true = (jax.random.uniform(k1, (2, 4, 16, 16)) > 0.5).astype(jnp.float32)
    y_pred = jax.random.uniform(k2, (2, 4, 16, 16), dtype=jnp.float32)

    smooth = 0.0
    out = jax.block_until_ready(dice_score(y_true, y_pred, smooth=smooth))

    yt_ref = y_true.reshape(-1).astype(jnp.float32)
    yp_ref = y_pred.reshape(-1).astype(jnp.float32)
    ref = (2.0 * jnp.sum(yp_ref * yt_ref) + smooth) / (yp_ref.sum() + yt_ref.sum() + smooth + 1e-6)
    assert jnp.allclose(out, ref, rtol=1e-5, atol=1e-6), (out, ref)

    # Exercise the narrow-dtype streaming path (bool mask -> int8, f32 preds).
    k3, k4 = jax.random.split(k2)
    y_true_b = jax.random.uniform(k3, (2, 4, 32, 16)) > 0.5          # bool
    y_pred_b = jax.random.uniform(k4, (2, 4, 32, 16), dtype=jnp.float32)
    out_b = jax.block_until_ready(dice_score(y_true_b, y_pred_b, smooth=0.5))
    ytb = y_true_b.reshape(-1).astype(jnp.float32)
    ypb = y_pred_b.reshape(-1).astype(jnp.float32)
    ref_b = (2.0 * jnp.sum(ypb * ytb) + 0.5) / (ypb.sum() + ytb.sum() + 0.5 + 1e-6)
    assert jnp.allclose(out_b, ref_b, rtol=1e-5, atol=1e-6), (out_b, ref_b)

    print("KERNEL_OK")
</pallas_src>

<mosaic_0001>
module attributes {stable_mosaic.version = 11 : i64} {
  func.func @_dice_partial_kernel(%arg0: i32, %arg1: i32, %arg2: memref<32x128xf32, #tpu.memory_space<vmem>>, %arg3: memref<32x128xf32, #tpu.memory_space<vmem>>, %arg4: memref<1x3x32x128xf32, #tpu.memory_space<vmem>>) attributes {dimension_semantics = [#tpu.dimension_semantics<parallel>, #tpu.dimension_semantics<arbitrary>], iteration_bounds = array<i64: 1, 1>, scalar_prefetch = 0 : i64, scratch_operands = 0 : i64, tpu.core_type = #tpu.core_type<tc>, window_params = [{transform_indices = @transform_0, window_bounds = array<i64: 32, 128>}, {transform_indices = @transform_1, window_bounds = array<i64: 32, 128>}, {transform_indices = @transform_2, window_bounds = array<i64: 1, 3, 32, 128>}]} {
    %c0_i32 = arith.constant 0 : i32
    %0 = arith.cmpi eq, %arg1, %c0_i32 : i32
    %1 = arith.extui %0 : i1 to i32
    %c0_i32_0 = arith.constant 0 : i32
    %2 = arith.cmpi ne, %1, %c0_i32_0 : i32
    scf.if %2 {
      %cst = arith.constant 0.000000e+00 : f32
      %13 = vector.broadcast %cst : f32 to vector<1x3x32x128xf32>
      %c0_8 = arith.constant 0 : index
      %c0_9 = arith.constant 0 : index
      %c0_10 = arith.constant 0 : index
      %c0_11 = arith.constant 0 : index
      %14 = vector.load %arg4[%c0_8, %c0_9, %c0_10, %c0_11] : memref<1x3x32x128xf32, #tpu.memory_space<vmem>>, vector<1x3x32x128xf32>
      tpu.vector_store %arg4[%c0_8, %c0_9, %c0_10, %c0_11], %13 {strides = array<i32>} : memref<1x3x32x128xf32, #tpu.memory_space<vmem>>, vector<1x3x32x128xf32>,
    } else {
    }
    %c0 = arith.constant 0 : index
    %c0_1 = arith.constant 0 : index
    %3 = vector.load %arg2[%c0, %c0_1] : memref<32x128xf32, #tpu.memory_space<vmem>>, vector<32x128xf32>
    %c0_2 = arith.constant 0 : index
    %c0_3 = arith.constant 0 : index
    %4 = vector.load %arg3[%c0_2, %c0_3] : memref<32x128xf32, #tpu.memory_space<vmem>>, vector<32x128xf32>
    %c0_i32_4 = arith.constant 0 : i32
    %5 = arith.cmpi eq, %arg0, %c0_i32_4 : i32
    %c0_i32_5 = arith.constant 0 : i32
    %6 = arith.cmpi eq, %arg1, %c0_i32_5 : i32
    %7 = arith.andi %5, %6 : i1
    %true = arith.constant true
    %8 = arith.xori %7, %true : i1
    %9 = arith.extui %8 : i1 to i32
    %c0_i32_6 = arith.constant 0 : i32
    %10 = arith.cmpi ne, %9, %c0_i32_6 : i32
    scf.if %10 {
      %13 = arith.mulf %3, %4 : vector<32x128xf32>
      %c0_8 = arith.constant 0 : index
      %c0_9 = arith.constant 0 : index
      %c0_10 = arith.constant 0 : index
      %c0_11 = arith.constant 0 : index
      %14 = vector.load %arg4[%c0_8, %c0_9, %c0_10, %c0_11] : memref<1x3x32x128xf32, #tpu.memory_space<vmem>>, vector<1x1x32x128xf32>
      %15 = vector.shape_cast %14 : vector<1x1x32x128xf32> to vector<32x128xf32>
      %16 = vector.shape_cast %13 : vector<32x128xf32> to vector<1x32x128xf32>
      %cst = arith.constant dense<0.000000e+00> : vector<32x128xf32>
      %17 = vector.multi_reduction <add>, %16, %cst [0] : vector<1x32x128xf32> to vector<32x128xf32>
      %18 = arith.addf %15, %17 : vector<32x128xf32>
      %c0_12 = arith.constant 0 : index
      %c0_13 = arith.constant 0 : index
      %c0_14 = arith.constant 0 : index
      %c0_15 = arith.constant 0 : index
      %19 = vector.load %arg4[%c0_12, %c0_13, %c0_14, %c0_15] : memref<1x3x32x128xf32, #tpu.memory_space<vmem>>, vector<1x1x32x128xf32>
      %20 = vector.shape_cast %19 : vector<1x1x32x128xf32> to vector<32x128xf32>
      %21 = vector.shape_cast %18 : vector<32x128xf32> to vector<1x1x32x128xf32>
      tpu.vector_store %arg4[%c0_12, %c0_13, %c0_14, %c0_15], %21 {strides = array<i32>} : memref<1x3x32x128xf32, #tpu.memory_space<vmem>>, vector<1x1x32x128xf32>,
      %c0_16 = arith.constant 0 : index
      %c1 = arith.constant 1 : index
      %c0_17 = arith.constant 0 : index
      %c0_18 = arith.constant 0 : index
      %22 = vector.load %arg4[%c0_16, %c1, %c0_17, %c0_18] : memref<1x3x32x128xf32, #tpu.memory_space<vmem>>, vector<1x1x32x128xf32>
      %23 = vector.shape_cast %22 : vector<1x1x32x128xf32> to vector<32x128xf32>
      %24 = vector.shape_cast %3 : vector<32x128xf32> to vector<1x32x128xf32>
      %cst_19 = arith.constant dense<0.000000e+00> : vector<32x128xf32>
      %25 = vector.multi_reduction <add>, %24, %cst_19 [0] : vector<1x32x128xf32> to vector<32x128xf32>
      %26 = arith.addf %23, %25 : vector<32x128xf32>
      %c0_20 = arith.constant 0 : index
      %c1_21 = arith.constant 1 : index
      %c0_22 = arith.constant 0 : index
      %c0_23 = arith.constant 0 : index
      %27 = vector.load %arg4[%c0_20, %c1_21, %c0_22, %c0_23] : memref<1x3x32x128xf32, #tpu.memory_space<vmem>>, vector<1x1x32x128xf32>
      %28 = vector.shape_cast %27 : vector<1x1x32x128xf32> to vector<32x128xf32>
      %29 = vector.shape_cast %26 : vector<32x128xf32> to vector<1x1x32x128xf32>
      tpu.vector_store %arg4[%c0_20, %c1_21, %c0_22, %c0_23], %29 {strides = array<i32>} : memref<1x3x32x128xf32, #tpu.memory_space<vmem>>, vector<1x1x32x128xf32>,
      %c0_24 = arith.constant 0 : index
      %c2 = arith.constant 2 : index
      %c0_25 = arith.constant 0 : index
      %c0_26 = arith.constant 0 : index
      %30 = vector.load %arg4[%c0_24, %c2, %c0_25, %c0_26] : memref<1x3x32x128xf32, #tpu.memory_space<vmem>>, vector<1x1x32x128xf32>
      %31 = vector.shape_cast %30 : vector<1x1x32x128xf32> to vector<32x128xf32>
      %32 = vector.shape_cast %4 : vector<32x128xf32> to vector<1x32x128xf32>
      %cst_27 = arith.constant dense<0.000000e+00> : vector<32x128xf32>
      %33 = vector.multi_reduction <add>, %32, %cst_27 [0] : vector<1x32x128xf32> to vector<32x128xf32>
      %34 = arith.addf %31, %33 : vector<32x128xf32>
      %c0_28 = arith.constant 0 : index
      %c2_29 = arith.constant 2 : index
      %c0_30 = arith.constant 0 : index
      %c0_31 = arith.constant 0 : index
      %35 = vector.load %arg4[%c0_28, %c2_29, %c0_30, %c0_31] : memref<1x3x32x128xf32, #tpu.memory_space<vmem>>, vector<1x1x32x128xf32>
      %36 = vector.shape_cast %35 : vector<1x1x32x128xf32> to vector<32x128xf32>
      %37 = vector.shape_cast %34 : vector<32x128xf32> to vector<1x1x32x128xf32>
      tpu.vector_store %arg4[%c0_28, %c2_29, %c0_30, %c0_31], %37 {strides = array<i32>} : memref<1x3x32x128xf32, #tpu.memory_space<vmem>>, vector<1x1x32x128xf32>,
    } else {
    }
    %11 = arith.extui %7 : i1 to i32
    %c0_i32_7 = arith.constant 0 : i32
    %12 = arith.cmpi ne, %11, %c0_i32_7 : i32
    scf.if %12 {
      %13 = tpu.iota {dimensions = array<i32: 0>} : vector<32x128xi32>
      %c16_i32 = arith.constant 16 : i32
      %14 = vector.broadcast %c16_i32 : i32 to vector<32x128xi32>
      %15 = arith.cmpi slt, %13, %14 : vector<32x128xi32>
      %cst = arith.constant 0.000000e+00 : f32
      %16 = vector.broadcast %cst : f32 to vector<32x128xf32>
      %17 = arith.select %15, %3, %16 : vector<32x128xi1>, vector<32x128xf32>
      %cst_8 = arith.constant 0.000000e+00 : f32
      %18 = vector.broadcast %cst_8 : f32 to vector<32x128xf32>
      %19 = arith.select %15, %4, %18 : vector<32x128xi1>, vector<32x128xf32>
      %20 = arith.mulf %17, %19 : vector<32x128xf32>
      %c0_9 = arith.constant 0 : index
      %c0_10 = arith.constant 0 : index
      %c0_11 = arith.constant 0 : index
      %c0_12 = arith.constant 0 : index
      %21 = vector.load %arg4[%c0_9, %c0_10, %c0_11, %c0_12] : memref<1x3x32x128xf32, #tpu.memory_space<vmem>>, vector<1x1x32x128xf32>
      %22 = vector.shape_cast %21 : vector<1x1x32x128xf32> to vector<32x128xf32>
      %23 = vector.shape_cast %20 : vector<32x128xf32> to vector<1x32x128xf32>
      %cst_13 = arith.constant dense<0.000000e+00> : vector<32x128xf32>
      %24 = vector.multi_reduction <add>, %23, %cst_13 [0] : vector<1x32x128xf32> to vector<32x128xf32>
      %25 = arith.addf %22, %24 : vector<32x128xf32>
      %c0_14 = arith.constant 0 : index
      %c0_15 = arith.constant 0 : index
      %c0_16 = arith.constant 0 : index
      %c0_17 = arith.constant 0 : index
      %26 = vector.load %arg4[%c0_14, %c0_15, %c0_16, %c0_17] : memref<1x3x32x128xf32, #tpu.memory_space<vmem>>, vector<1x1x32x128xf32>
      %27 = vector.shape_cast %26 : vector<1x1x32x128xf32> to vector<32x128xf32>
      %28 = vector.shape_cast %25 : vector<32x128xf32> to vector<1x1x32x128xf32>
      tpu.vector_store %arg4[%c0_14, %c0_15, %c0_16, %c0_17], %28 {strides = array<i32>} : memref<1x3x32x128xf32, #tpu.memory_space<vmem>>, vector<1x1x32x128xf32>,
      %c0_18 = arith.constant 0 : index
      %c1 = arith.constant 1 : index
      %c0_19 = arith.constant 0 : index
      %c0_20 = arith.constant 0 : index
      %29 = vector.load %arg4[%c0_18, %c1, %c0_19, %c0_20] : memref<1x3x32x128xf32, #tpu.memory_space<vmem>>, vector<1x1x32x128xf32>
      %30 = vector.shape_cast %29 : vector<1x1x32x128xf32> to vector<32x128xf32>
      %31 = vector.shape_cast %17 : vector<32x128xf32> to vector<1x32x128xf32>
      %cst_21 = arith.constant dense<0.000000e+00> : vector<32x128xf32>
      %32 = vector.multi_reduction <add>, %31, %cst_21 [0] : vector<1x32x128xf32> to vector<32x128xf32>
      %33 = arith.addf %30, %32 : vector<32x128xf32>
      %c0_22 = arith.constant 0 : index
      %c1_23 = arith.constant 1 : index
      %c0_24 = arith.constant 0 : index
      %c0_25 = arith.constant 0 : index
      %34 = vector.load %arg4[%c0_22, %c1_23, %c0_24, %c0_25] : memref<1x3x32x128xf32, #tpu.memory_space<vmem>>, vector<1x1x32x128xf32>
      %35 = vector.shape_cast %34 : vector<1x1x32x128xf32> to vector<32x128xf32>
      %36 = vector.shape_cast %33 : vector<32x128xf32> to vector<1x1x32x128xf32>
      tpu.vector_store %arg4[%c0_22, %c1_23, %c0_24, %c0_25], %36 {strides = array<i32>} : memref<1x3x32x128xf32, #tpu.memory_space<vmem>>, vector<1x1x32x128xf32>,
      %c0_26 = arith.constant 0 : index
      %c2 = arith.constant 2 : index
      %c0_27 = arith.constant 0 : index
      %c0_28 = arith.constant 0 : index
      %37 = vector.load %arg4[%c0_26, %c2, %c0_27, %c0_28] : memref<1x3x32x128xf32, #tpu.memory_space<vmem>>, vector<1x1x32x128xf32>
      %38 = vector.shape_cast %37 : vector<1x1x32x128xf32> to vector<32x128xf32>
      %39 = vector.shape_cast %19 : vector<32x128xf32> to vector<1x32x128xf32>
      %cst_29 = arith.constant dense<0.000000e+00> : vector<32x128xf32>
      %40 = vector.multi_reduction <add>, %39, %cst_29 [0] : vector<1x32x128xf32> to vector<32x128xf32>
      %41 = arith.addf %38, %40 : vector<32x128xf32>
      %c0_30 = arith.constant 0 : index
      %c2_31 = arith.constant 2 : index
      %c0_32 = arith.constant 0 : index
      %c0_33 = arith.constant 0 : index
      %42 = vector.load %arg4[%c0_30, %c2_31, %c0_32, %c0_33] : memref<1x3x32x128xf32, #tpu.memory_space<vmem>>, vector<1x1x32x128xf32>
      %43 = vector.shape_cast %42 : vector<1x1x32x128xf32> to vector<32x128xf32>
      %44 = vector.shape_cast %41 : vector<32x128xf32> to vector<1x1x32x128xf32>
      tpu.vector_store %arg4[%c0_30, %c2_31, %c0_32, %c0_33], %44 {strides = array<i32>} : memref<1x3x32x128xf32, #tpu.memory_space<vmem>>, vector<1x1x32x128xf32>,
    } else {
    }
    return
  }
  func.func @transform_0(%arg0: i32, %arg1: i32) -> (i32, i32) {
    %c1_i32 = arith.constant 1 : i32
    %0 = arith.muli %arg0, %c1_i32 : i32
    %1 = arith.addi %0, %arg1 : i32
    %c0_i32 = arith.constant 0 : i32
    %c0_i32_0 = arith.constant 0 : i32
    return %1, %c0_i32 : i32, i32
  }
  func.func @transform_1(%arg0: i32, %arg1: i32) -> (i32, i32) {
    %c1_i32 = arith.constant 1 : i32
    %0 = arith.muli %arg0, %c1_i32 : i32
    %1 = arith.addi %0, %arg1 : i32
    %c0_i32 = arith.constant 0 : i32
    %c0_i32_0 = arith.constant 0 : i32
    return %1, %c0_i32 : i32, i32
  }
  func.func @transform_2(%arg0: i32, %arg1: i32) -> (i32, i32, i32, i32) {
    %c0_i32 = arith.constant 0 : i32
    %c0_i32_0 = arith.constant 0 : i32
    %c0_i32_1 = arith.constant 0 : i32
    %c0_i32_2 = arith.constant 0 : i32
    return %arg0, %c0_i32, %c0_i32_0, %c0_i32_1 : i32, i32, i32, i32
  }
}

</mosaic_0001>

<llo_original>
// kernel: tpu_custom_call.1
$region0: #{tpu_custom_call.1}
  #allocation0 [shape = 'u32[]', space=smem, size = 0x4, offset = 0x4, fixed_abs, tag = 'smem constant byte address 0x4 - core index']
  #allocation1 [shape = 'u32[144,128]{1,0:T(1,128)}', space=vmem, size = 0x12000, scoped, tag = 'internal scratch']
  %s0 = inlined_call_operand.hbm [shape: f32[16,128], index: 0, kind: input, shape index: {}]
  %s1 = inlined_call_operand.hbm [shape: f32[16,128], index: 1, kind: input, shape index: {}]
  %s2 = inlined_call_operand.hbm [shape: f32[1,3,32,128], index: 2, kind: output, shape index: {}]
  %s3 = sld [smem:[#allocation0]]
  $region38: #{tpu_custom_call.1} parent=0
    _
  %s5 = ssub.s32 1, %s3
  %s6 = scalar_select 0, %s5, %s3
  $region1: #{tpu_custom_call.1} parent=0
    #allocation2 [shape = 'u8[16384]{0}', space=vmem, size = 0x4000, scoped, tag = 'input window, operand 0, single buffered']
    #allocation3 [shape = 's32[1]{0}', space=sflag, size = 0x4, scoped, tag = 'scoped memory for tpu_custom_call.1']
    #allocation4 [shape = 's32[1]{0}', space=sflag, size = 0x4, scoped, tag = 'scoped memory for tpu_custom_call.1']
    #allocation5 [shape = 'u8[16384]{0}', space=vmem, size = 0x4000, scoped, tag = 'input window, operand 1, single buffered']
    #allocation6 [shape = 's32[1]{0}', space=sflag, size = 0x4, scoped, tag = 'scoped memory for tpu_custom_call.1']
    #allocation7 [shape = 'u8[49152]{0}', space=vmem, size = 0xc000, scoped, tag = 'output window, operand 0, single buffered']
    %7 = vsyncpa [#allocation3], 0
    %8 = vsyncpa [#allocation6], 0
    %9 = vsyncpa [#allocation4], 0
    // Predicated region
    $region2: #{tpu_custom_call.1} parent=1 // pred_check
      _
    $region3: #{tpu_custom_call.1} parent=1 // pred_check_branch
      %11 = sbr.rel (0) target = $region5
    $region4: #{tpu_custom_call.1} parent=1 // pred_region
      %s12 = sadd.s32 0, 0
      %s13 = smul.u32 4, %s12
      %s14 = ssub.s32 2, %s13
      %s15 = smul.u32 128, %s14
      %s17 = ssub.s32 512, %s15
      %18 = vsyncadd [#allocation3], %s17
      %p19 = scmp.ne.s32.totalorder 0, %s15
      %s20 = smul.addr %s13, 128
      %s21 = scalar_lea.hbm %s0, %s20
      %s22 = smul.u32 8, %s14
      %s23 = sshll.u32 [#allocation2], 4
      %s24 = int_to_ptr.vmem [resolvable:$true] %s23
      %s25 = sshll.u32 %s22, 4
      %29 = dma.hbm_to_vmem [thread:$0]  (%p19), %s21, %s25, %s24, [#allocation3], 128, 128, 8
    $region5: #{tpu_custom_call.1} parent=1 // pred_fallthru
      _
    // Predicated region
    $region6: #{tpu_custom_call.1} parent=1 // pred_check
      _
    $region7: #{tpu_custom_call.1} parent=1 // pred_check_branch
      %31 = sbr.rel (0) target = $region9
    $region8: #{tpu_custom_call.1} parent=1 // pred_region
      %s32 = sadd.s32 0, 0
      %s33 = smul.u32 4, %s32
      %s34 = ssub.s32 2, %s33
      %s35 = smul.u32 128, %s34
      %s37 = ssub.s32 512, %s35
      %38 = vsyncadd [#allocation6], %s37
      %p39 = scmp.ne.s32.totalorder 0, %s35
      %s40 = smul.addr %s33, 128
      %s41 = scalar_lea.hbm %s1, %s40
      %s42 = smul.u32 8, %s34
      %s43 = sshll.u32 [#allocation5], 4
      %s44 = int_to_ptr.vmem [resolvable:$true] %s43
      %s45 = sshll.u32 %s42, 4
      %49 = dma.hbm_to_vmem [thread:$0]  (%p39), %s41, %s45, %s44, [#allocation6], 128, 128, 8
    $region9: #{tpu_custom_call.1} parent=1 // pred_fallthru
      _
    // Predicated region
    $region10: #{tpu_custom_call.1} parent=1 // pred_check
      _
    $region11: #{tpu_custom_call.1} parent=1 // pred_check_branch
      %51 = sbr.rel (0) target = $region13
    $region12: #{tpu_custom_call.1} parent=1 // pred_region
      %52 = dma.done [#allocation3], 512
    $region13: #{tpu_custom_call.1} parent=1 // pred_fallthru
      _
    // Predicated region
    $region14: #{tpu_custom_call.1} parent=1 // pred_check
      _
    $region15: #{tpu_custom_call.1} parent=1 // pred_check_branch
      %54 = sbr.rel (0) target = $region17
    $region16: #{tpu_custom_call.1} parent=1 // pred_region
      %55 = dma.done [#allocation6], 512
    $region17: #{tpu_custom_call.1} parent=1 // pred_fallthru
      _
    %s56 = sadd.s32 0, 0
    %s57 = smul.u32 4, %s56
    %s58 = ssub.s32 2, %s57
    %s59 = smul.u32 128, %s58
    %s60 = sadd.s32 0, 0
    %s61 = smul.u32 4, %s60
    %s62 = ssub.s32 2, %s61
    %s63 = smul.u32 128, %s62
    %p64 = scmp.eq.s32.totalorder 0, 0
    // Predicated region
    $region18: #{tpu_custom_call.1} parent=1 // pred_check
      %p65 = pneg %p64
    $region19: #{tpu_custom_call.1} parent=1 // pred_check_branch
      %67 = sbr.rel (%p65) target = $region21
    $region20: #{tpu_custom_call.1} parent=1 // pred_region
      %68 = vst [vmem:[#allocation7] sm:$0xff] 0.0
      %69 = vst [vmem:[#allocation7 + $0x8] sm:$0xff] 0.0
      %70 = vst [vmem:[#allocation7 + $0x10] sm:$0xff] 0.0
      %71 = vst [vmem:[#allocation7 + $0x18] sm:$0xff] 0.0
      %72 = vst [vmem:[#allocation7 + $0x20] sm:$0xff] 0.0
      %73 = vst [vmem:[#allocation7 + $0x28] sm:$0xff] 0.0
      %74 = vst [vmem:[#allocation7 + $0x30] sm:$0xff] 0.0
      %75 = vst [vmem:[#allocation7 + $0x38] sm:$0xff] 0.0
      %76 = vst [vmem:[#allocation7 + $0x40] sm:$0xff] 0.0
      %77 = vst [vmem:[#allocation7 + $0x48] sm:$0xff] 0.0
      %78 = vst [vmem:[#allocation7 + $0x50] sm:$0xff] 0.0
      %79 = vst [vmem:[#allocation7 + $0x58] sm:$0xff] 0.0
    $region21: #{tpu_custom_call.1} parent=1 // pred_fallthru
      _
    %v80 = vld [vmem:[#allocation2] sm:$0xff]
    %v81 = vld [vmem:[#allocation2 + $0x8] sm:$0xff]
    %v82 = vld [vmem:[#allocation2 + $0x10] sm:$0xff]
    %v83 = vld [vmem:[#allocation2 + $0x18] sm:$0xff]
    %v84 = vld [vmem:[#allocation5] sm:$0xff]
    %v85 = vld [vmem:[#allocation5 + $0x8] sm:$0xff]
    %v86 = vld [vmem:[#allocation5 + $0x10] sm:$0xff]
    %v87 = vld [vmem:[#allocation5 + $0x18] sm:$0xff]
    %p88 = scmp.eq.s32.totalorder 0, 0
    %p89 = pnand %p88, %p64
    %p90 = pneg %p89
    // Predicated region
    $region22: #{tpu_custom_call.1} parent=1 // pred_check
      _
    $region23: #{tpu_custom_call.1} parent=1 // pred_check_branch
      %92 = sbr.rel (%p89) target = $region25
    $region24: #{tpu_custom_call.1} parent=1 // pred_region
      %v93 = vlaneseq
      %v94 = vshrl.u32 %v93, 7
      %v95 = vadd.s32 %v94, 8
      %v96 = vadd.s32 %v94, 16
      %v97 = vadd.s32 %v94, 24
      %vm98 = vcmp.lt.s32.totalorder %v94, 16
      %vm99 = vcmp.lt.s32.totalorder %v95, 16
      %vm100 = vcmp.lt.s32.totalorder %v96, 16
      %vm101 = vcmp.lt.s32.totalorder %v97, 16
      %v102 = vsel %vm98, %v80, 0.0
      %v103 = vsel %vm99, %v81, 0.0
      %v104 = vsel %vm100, %v82, 0.0
      %v105 = vsel %vm101, %v83, 0.0
      %v106 = vsel %vm98, %v84, 0.0
      %v107 = vsel %vm99, %v85, 0.0
      %v108 = vsel %vm100, %v86, 0.0
      %v109 = vsel %vm101, %v87, 0.0
      %v110 = vmul.f32 %v102, %v106
      %v111 = vmul.f32 %v103, %v107
      %v112 = vmul.f32 %v104, %v108
      %v113 = vmul.f32 %v105, %v109
      %v114 = vld [vmem:[#allocation7] sm:$0xff]
      %v115 = vld [vmem:[#allocation7 + $0x8] sm:$0xff]
      %v116 = vld [vmem:[#allocation7 + $0x10] sm:$0xff]
      %v117 = vld [vmem:[#allocation7 + $0x18] sm:$0xff]
      %v118 = vadd.f32 %v110, 0.0
      %v119 = vadd.f32 %v111, 0.0
      %v120 = vadd.f32 %v112, 0.0
      %v121 = vadd.f32 %v113, 0.0
      %v122 = vadd.f32 %v114, %v118
      %v123 = vadd.f32 %v115, %v119
      %v124 = vadd.f32 %v116, %v120
      %v125 = vadd.f32 %v117, %v121
      %126 = vst [vmem:[#allocation7] sm:$0xff] %v122
      %127 = vst [vmem:[#allocation7 + $0x8] sm:$0xff] %v123
      %128 = vst [vmem:[#allocation7 + $0x10] sm:$0xff] %v124
      %129 = vst [vmem:[#allocation7 + $0x18] sm:$0xff] %v125
      %s130 = scalar_lea.vmem [#allocation7], 32
      %v131 = vld [vmem:[%s130] sm:$0xff]
      %v132 = vld [vmem:[%s130 + $0x8] sm:$0xff]
      %v133 = vld [vmem:[%s130 + $0x10] sm:$0xff]
      %v134 = vld [vmem:[%s130 + $0x18] sm:$0xff]
      %v135 = vadd.f32 %v102, 0.0
      %v136 = vadd.f32 %v103, 0.0
      %v137 = vadd.f32 %v104, 0.0
      %v138 = vadd.f32 %v105, 0.0
      %v139 = vadd.f32 %v131, %v135
      %v140 = vadd.f32 %v132, %v136
      %v141 = vadd.f32 %v133, %v137
      %v142 = vadd.f32 %v134, %v138
      %143 = vst [vmem:[%s130] sm:$0xff] %v139
      %144 = vst [vmem:[%s130 + $0x8] sm:$0xff] %v140
      %145 = vst [vmem:[%s130 + $0x10] sm:$0xff] %v141
      %146 = vst [vmem:[%s130 + $0x18] sm:$0xff] %v142
      %s147 = scalar_lea.vmem [#allocation7], 64
      %v148 = vld [vmem:[%s147] sm:$0xff]
      %v149 = vld [vmem:[%s147 + $0x8] sm:$0xff]
      %v150 = vld [vmem:[%s147 + $0x10] sm:$0xff]
      %v151 = vld [vmem:[%s147 + $0x18] sm:$0xff]
      %v152 = vadd.f32 %v106, 0.0
      %v153 = vadd.f32 %v107, 0.0
      %v154 = vadd.f32 %v108, 0.0
      %v155 = vadd.f32 %v109, 0.0
      %v156 = vadd.f32 %v148, %v152
      %v157 = vadd.f32 %v149, %v153
      %v158 = vadd.f32 %v150, %v154
      %v159 = vadd.f32 %v151, %v155
      %160 = vst [vmem:[%s147] sm:$0xff] %v156
      %161 = vst [vmem:[%s147 + $0x8] sm:$0xff] %v157
      %162 = vst [vmem:[%s147 + $0x10] sm:$0xff] %v158
      %163 = vst [vmem:[%s147 + $0x18] sm:$0xff] %v159
    $region25: #{tpu_custom_call.1} parent=1 // pred_fallthru
      _
    // Predicated region
    $region26: #{tpu_custom_call.1} parent=1 // pred_check
      %p164 = pneg %p89
    $region27: #{tpu_custom_call.1} parent=1 // pred_check_branch
      %166 = sbr.rel (%p164) target = $region29
    $region28: #{tpu_custom_call.1} parent=1 // pred_region
      %v167 = vmul.f32 %v80, %v84
      %v168 = vmul.f32 %v81, %v85
      %v169 = vmul.f32 %v82, %v86
      %v170 = vmul.f32 %v83, %v87
      %v171 = vld [vmem:[#allocation7] sm:$0xff]
      %v172 = vld [vmem:[#allocation7 + $0x8] sm:$0xff]
      %v173 = vld [vmem:[#allocation7 + $0x10] sm:$0xff]
      %v174 = vld [vmem:[#allocation7 + $0x18] sm:$0xff]
      %v175 = vadd.f32 %v167, 0.0
      %v176 = vadd.f32 %v168, 0.0
      %v177 = vadd.f32 %v169, 0.0
      %v178 = vadd.f32 %v170, 0.0
      %v179 = vadd.f32 %v171, %v175
      %v180 = vadd.f32 %v172, %v176
      %v181 = vadd.f32 %v173, %v177
      %v182 = vadd.f32 %v174, %v178
      %183 = vst [vmem:[#allocation7] sm:$0xff] %v179
      %184 = vst [vmem:[#allocation7 + $0x8] sm:$0xff] %v180
      %185 = vst [vmem:[#allocation7 + $0x10] sm:$0xff] %v181
      %186 = vst [vmem:[#allocation7 + $0x18] sm:$0xff] %v182
      %s187 = scalar_lea.vmem [#allocation7], 32
      %v188 = vld [vmem:[%s187] sm:$0xff]
      %v189 = vld [vmem:[%s187 + $0x8] sm:$0xff]
      %v190 = vld [vmem:[%s187 + $0x10] sm:$0xff]
      %v191 = vld [vmem:[%s187 + $0x18] sm:$0xff]
      %v192 = vadd.f32 %v80, 0.0
      %v193 = vadd.f32 %v81, 0.0
      %v194 = vadd.f32 %v82, 0.0
      %v195 = vadd.f32 %v83, 0.0
      %v196 = vadd.f32 %v188, %v192
      %v197 = vadd.f32 %v189, %v193
      %v198 = vadd.f32 %v190, %v194
      %v199 = vadd.f32 %v191, %v195
      %200 = vst [vmem:[%s187] sm:$0xff] %v196
      %201 = vst [vmem:[%s187 + $0x8] sm:$0xff] %v197
      %202 = vst [vmem:[%s187 + $0x10] sm:$0xff] %v198
      %203 = vst [vmem:[%s187 + $0x18] sm:$0xff] %v199
      %s204 = scalar_lea.vmem [#allocation7], 64
      %v205 = vld [vmem:[%s204] sm:$0xff]
      %v206 = vld [vmem:[%s204 + $0x8] sm:$0xff]
      %v207 = vld [vmem:[%s204 + $0x10] sm:$0xff]
      %v208 = vld [vmem:[%s204 + $0x18] sm:$0xff]
      %v209 = vadd.f32 %v84, 0.0
      %v210 = vadd.f32 %v85, 0.0
      %v211 = vadd.f32 %v86, 0.0
      %v212 = vadd.f32 %v87, 0.0
      %v213 = vadd.f32 %v205, %v209
      %v214 = vadd.f32 %v206, %v210
      %v215 = vadd.f32 %v207, %v211
      %v216 = vadd.f32 %v208, %v212
      %217 = vst [vmem:[%s204] sm:$0xff] %v213
      %218 = vst [vmem:[%s204 + $0x8] sm:$0xff] %v214
      %219 = vst [vmem:[%s204 + $0x10] sm:$0xff] %v215
      %220 = vst [vmem:[%s204 + $0x18] sm:$0xff] %v216
    $region29: #{tpu_custom_call.1} parent=1 // pred_fallthru
      _
    // Predicated region
    $region30: #{tpu_custom_call.1} parent=1 // pred_check
      _
    $region31: #{tpu_custom_call.1} parent=1 // pred_check_branch
      %222 = sbr.rel (0) target = $region33
    $region32: #{tpu_custom_call.1} parent=1 // pred_region
      %s224 = ssub.s32 1536, 1536
      %225 = vsyncadd [#allocation4], %s224
      %s226 = sshll.u32 [#allocation7], 4
      %s227 = int_to_ptr.vmem [resolvable:$true] %s226
      %232 = dma.vmem_to_hbm [thread:$0]  %s227, 1536, %s2, [#allocation4], 128, 128, 8
    $region33: #{tpu_custom_call.1} parent=1 // pred_fallthru
      _
    // Predicated region
    $region34: #{tpu_custom_call.1} parent=1 // pred_check
      _
    $region35: #{tpu_custom_call.1} parent=1 // pred_check_branch
      %234 = sbr.rel (0) target = $region37
    $region36: #{tpu_custom_call.1} parent=1 // pred_region
      %235 = dma.done [#allocation4], 1536
    $region37: #{tpu_custom_call.1} parent=1 // pred_fallthru
      _
    %236 = vsyncpa [#allocation3], 1
    %237 = vsyncpa [#allocation6], 1
    %238 = vsyncpa [#allocation4], 1

</llo_original>
